<compile_context>
chip_gen: v5e
topology: v5e:2x2
jax: 0.10.0
libtpu: 0.0.40
codegen_flags: <defaults>
</compile_context>

<pallas_src>
import functools

import jax
import jax.numpy as jnp
from jax import lax
from jax.experimental import pallas as pl
from jax.experimental.pallas import tpu as pltpu


def _confidence_ce_kernel(weak_ref, strong_ref, loss_ref, n_ref,
                          counts_ref, nll_sum_ref, *,
                          threshold, apply_class_balancing, batch):
    step = pl.program_id(0)
    tb, c = weak_ref.shape

    @pl.when(step == 0)
    def _init():
        counts_ref[...] = jnp.zeros_like(counts_ref)
        nll_sum_ref[...] = jnp.zeros_like(nll_sum_ref)

    weak = weak_ref[...].astype(jnp.float32)      # (tb, c)
    strong = strong_ref[...].astype(jnp.float32)  # (tb, c)

    # ---- weak branch: argmax on raw logits; max(softmax) = 1 / sum_exp ----
    w_max = jnp.max(weak, axis=1, keepdims=True)                    # (tb, 1)
    sum_exp = jnp.sum(jnp.exp(weak - w_max), axis=1, keepdims=True)  # (tb, 1)
    max_prob = pl.reciprocal(sum_exp)                                # (tb, 1)

    col = lax.broadcasted_iota(jnp.int32, (tb, c), 1)                # (tb, c)
    target = jnp.min(jnp.where(weak == w_max, col, c), axis=1,
                     keepdims=True)                                  # (tb, 1)

    # Row-validity mask handles batch padding to a multiple of the tile.
    row = lax.broadcasted_iota(jnp.int32, (tb, 1), 0)
    valid = (step * tb + row) < batch
    mask = jnp.logical_and(max_prob > threshold, valid).astype(jnp.float32)

    onehot = (col == target).astype(jnp.float32)                     # (tb, c)

    # ---- strong branch: NLL of log-softmax at target ----
    s_max = jnp.max(strong, axis=1, keepdims=True)
    s_shift = strong - s_max
    log_sm = s_shift - jnp.log(jnp.sum(jnp.exp(s_shift), axis=1,
                                       keepdims=True))               # (tb, c)
    nll = -jnp.sum(onehot * log_sm, axis=1, keepdims=True)           # (tb, 1)

    # ---- per-class accumulation (persists across grid steps) ----
    masked_onehot = onehot * mask                                    # (tb, c)
    counts_ref[...] += jnp.sum(masked_onehot, axis=0, keepdims=True)
    nll_sum_ref[...] += jnp.sum(masked_onehot * nll, axis=0, keepdims=True)

    @pl.when(step == pl.num_programs(0) - 1)
    def _finalize():
        counts = counts_ref[...]                                     # (1, c)
        nll_sum = nll_sum_ref[...]                                   # (1, c)
        n = jnp.sum(counts)
        if apply_class_balancing:
            present = counts > 0.0
            n_present = jnp.sum(present.astype(jnp.float32))
            num = jnp.sum(jnp.where(present,
                                    nll_sum / jnp.maximum(counts, 1.0), 0.0))
            loss = num / n_present          # == weighted mean (n cancels)
        else:
            loss = jnp.sum(nll_sum) / n
        loss_ref[0, 0] = loss               # NaN if mask is all zeros
        n_ref[0, 0] = n


def _choose_tile_rows(b, c, itemsize):
    # Double-buffered inputs (2 arrays x 2 buffers) plus ~6 f32 temporaries
    # per element; keep the total around 20 MiB so it is safe on v7x's 64 MiB
    # VMEM while still large enough to hide per-step overhead on v5e/v6e.
    budget = 20 * 1024 * 1024
    per_row = c * (4 * itemsize + 6 * 4)
    tb = max(8, min(2048, budget // max(per_row, 1)))
    tb = (tb // 8) * 8
    b_ceil8 = ((b + 7) // 8) * 8
    return min(tb, b_ceil8)


def confidence_based_ce(anchors_weak, anchors_strong, *, threshold,
                        apply_class_balancing, validate=False):
    """JAX/Pallas equivalent of ConfidenceBasedCE.forward (jittable when
    validate=False)."""
    assert anchors_weak.shape == anchors_strong.shape
    b, c = anchors_weak.shape
    itemsize = jnp.dtype(anchors_weak.dtype).itemsize

    tb = _choose_tile_rows(b, c, itemsize)
    num_blocks = -(-b // tb)
    b_pad = num_blocks * tb
    if b_pad != b:
        pad = ((0, b_pad - b), (0, 0))
        anchors_weak = jnp.pad(anchors_weak, pad)
        anchors_strong = jnp.pad(anchors_strong, pad)

    kernel = functools.partial(
        _confidence_ce_kernel,
        threshold=float(threshold),
        apply_class_balancing=bool(apply_class_balancing),
        batch=int(b),
    )

    loss, n = pl.pallas_call(
        kernel,
        out_shape=(jax.ShapeDtypeStruct((1, 1), jnp.float32),
                   jax.ShapeDtypeStruct((1, 1), jnp.float32)),
        grid=(num_blocks,),
        in_specs=[
            pl.BlockSpec((tb, c), lambda i: (i, 0)),
            pl.BlockSpec((tb, c), lambda i: (i, 0)),
        ],
        out_specs=(
            pl.BlockSpec(memory_space=pltpu.SMEM),
            pl.BlockSpec(memory_space=pltpu.SMEM),
        ),
        scratch_shapes=[
            pltpu.VMEM((1, c), jnp.float32),   # per-class counts
            pltpu.VMEM((1, c), jnp.float32),   # per-class nll sums
        ],
        compiler_params=pltpu.CompilerParams(
            dimension_semantics=("arbitrary",),
            vmem_limit_bytes=32 * 1024 * 1024,
        ),
    )(anchors_weak, anchors_strong)

    if validate:
        # Optional host-side check mirroring the PyTorch ValueError; forces a
        # device sync, so leave it off under jax.jit (loss is NaN in that case).
        if float(n[0, 0]) <= 0.0:
            raise ValueError("Mask in MaskedCrossEntropyLoss is all zeros.")
    return loss[0, 0]


if __name__ == "__main__":
    key = jax.random.PRNGKey(0)
    k1, k2 = jax.random.split(key)

    B, C = 64, 16
    # Scale the weak logits so a good fraction of rows clears the threshold.
    anchors_weak = 3.0 * jax.random.normal(k1, (B, C), dtype=jnp.float32)
    anchors_strong = jax.random.normal(k2, (B, C), dtype=jnp.float32)

    THR = 0.5

    loss = confidence_based_ce(
        anchors_weak, anchors_strong,
        threshold=THR, apply_class_balancing=True, validate=True,
    )
    loss = jax.block_until_ready(loss)
    assert bool(jnp.isfinite(loss)), "loss is not finite"

    # Pure-JAX reference (mirrors the PyTorch module).
    prob = jax.nn.softmax(anchors_weak, axis=1)
    maxp = prob.max(axis=1)
    tgt = prob.argmax(axis=1)
    m = (maxp > THR).astype(jnp.float32)
    n_ref = m.sum()
    counts = jnp.zeros((C,), jnp.float32).at[tgt].add(m)
    w = jnp.where(counts > 0.0, n_ref / jnp.maximum(counts, 1.0), 1.0)
    logsm = jax.nn.log_softmax(anchors_strong, axis=1)
    nll = -jnp.take_along_axis(logsm, tgt[:, None], axis=1)[:, 0]
    wi = w[tgt]
    ref = (m * wi * nll).sum() / (m * wi).sum()
    assert bool(jnp.allclose(loss, ref, rtol=1e-4, atol=1e-4)), (loss, ref)

    # Exercise the jittable path (no host-side validation).
    jitted = jax.jit(functools.partial(
        confidence_based_ce, threshold=THR, apply_class_balancing=True))
    loss_j = jax.block_until_ready(jitted(anchors_weak, anchors_strong))
    assert bool(jnp.allclose(loss, loss_j, rtol=1e-5, atol=1e-6)), (loss, loss_j)

    print("KERNEL_OK")
</pallas_src>

<mosaic_0001>
module attributes {stable_mosaic.version = 11 : i64} {
  func.func @_confidence_ce_kernel(%arg0: i32, %arg1: memref<64x16xf32, #tpu.memory_space<vmem>>, %arg2: memref<64x16xf32, #tpu.memory_space<vmem>>, %arg3: memref<1x1xf32, #tpu.memory_space<smem>>, %arg4: memref<1x1xf32, #tpu.memory_space<smem>>, %arg5: memref<1x16xf32, #tpu.memory_space<vmem>>, %arg6: memref<1x16xf32, #tpu.memory_space<vmem>>) attributes {dimension_semantics = [#tpu.dimension_semantics<arbitrary>], iteration_bounds = array<i64: 1>, scalar_prefetch = 0 : i64, scratch_operands = 2 : i64, tpu.core_type = #tpu.core_type<tc>, window_params = [{transform_indices = @transform_0, window_bounds = array<i64: 64, 16>}, {transform_indices = @transform_1, window_bounds = array<i64: 64, 16>}, {transform_indices = @transform_2, window_bounds = array<i64: 1, 1>}, {transform_indices = @transform_3, window_bounds = array<i64: 1, 1>}]} {
    %c0_i32 = arith.constant 0 : i32
    %0 = arith.cmpi eq, %arg0, %c0_i32 : i32
    %1 = arith.extui %0 : i1 to i32
    %c0_i32_0 = arith.constant 0 : i32
    %2 = arith.cmpi ne, %1, %c0_i32_0 : i32
    scf.if %2 {
      %cst_24 = arith.constant 0.000000e+00 : f32
      %67 = vector.broadcast %cst_24 : f32 to vector<1x16xf32>
      %c0_25 = arith.constant 0 : index
      %c0_26 = arith.constant 0 : index
      %68 = vector.load %arg5[%c0_25, %c0_26] : memref<1x16xf32, #tpu.memory_space<vmem>>, vector<1x16xf32>
      tpu.vector_store %arg5[%c0_25, %c0_26], %67 {strides = array<i32>} : memref<1x16xf32, #tpu.memory_space<vmem>>, vector<1x16xf32>,
      %cst_27 = arith.constant 0.000000e+00 : f32
      %69 = vector.broadcast %cst_27 : f32 to vector<1x16xf32>
      %c0_28 = arith.constant 0 : index
      %c0_29 = arith.constant 0 : index
      %70 = vector.load %arg6[%c0_28, %c0_29] : memref<1x16xf32, #tpu.memory_space<vmem>>, vector<1x16xf32>
      tpu.vector_store %arg6[%c0_28, %c0_29], %69 {strides = array<i32>} : memref<1x16xf32, #tpu.memory_space<vmem>>, vector<1x16xf32>,
    } else {
    }
    %c0 = arith.constant 0 : index
    %c0_1 = arith.constant 0 : index
    %3 = vector.load %arg1[%c0, %c0_1] : memref<64x16xf32, #tpu.memory_space<vmem>>, vector<64x16xf32>
    %c0_2 = arith.constant 0 : index
    %c0_3 = arith.constant 0 : index
    %4 = vector.load %arg2[%c0_2, %c0_3] : memref<64x16xf32, #tpu.memory_space<vmem>>, vector<64x16xf32>
    %cst = arith.constant dense<0xFF800000> : vector<64xf32>
    %5 = vector.multi_reduction <maximumf>, %3, %cst [1] : vector<64x16xf32> to vector<64xf32>
    %6 = vector.shape_cast %5 : vector<64xf32> to vector<64x1xf32>
    %7 = vector.broadcast %6 : vector<64x1xf32> to vector<64x16xf32>
    %8 = arith.subf %3, %7 : vector<64x16xf32>
    %9 = math.exp %8 : vector<64x16xf32>
    %cst_4 = arith.constant dense<0.000000e+00> : vector<64xf32>
    %10 = vector.multi_reduction <add>, %9, %cst_4 [1] : vector<64x16xf32> to vector<64xf32>
    %11 = vector.shape_cast %10 : vector<64xf32> to vector<64x1xf32>
    %12 = tpu.reciprocal %11 : vector<64x1xf32> -> vector<64x1xf32>
    %13 = tpu.iota {dimensions = array<i32: 1>} : vector<64x16xi32>
    %14 = vector.broadcast %6 : vector<64x1xf32> to vector<64x16xf32>
    %15 = arith.cmpf oeq, %3, %14 : vector<64x16xf32>
    %c16_i32 = arith.constant 16 : i32
    %16 = vector.broadcast %c16_i32 : i32 to vector<64x16xi32>
    %17 = arith.select %15, %13, %16 : vector<64x16xi1>, vector<64x16xi32>
    %cst_5 = arith.constant dense<2147483647> : vector<64xi32>
    %18 = vector.multi_reduction <minsi>, %17, %cst_5 [1] : vector<64x16xi32> to vector<64xi32>
    %19 = vector.shape_cast %18 : vector<64xi32> to vector<64x1xi32>
    %20 = tpu.iota {dimensions = array<i32: 0>} : vector<64x1xi32>
    %c64_i32 = arith.constant 64 : i32
    %21 = arith.muli %arg0, %c64_i32 : i32
    %22 = vector.broadcast %21 : i32 to vector<64x1xi32>
    %23 = arith.addi %22, %20 : vector<64x1xi32>
    %c64_i32_6 = arith.constant 64 : i32
    %24 = vector.broadcast %c64_i32_6 : i32 to vector<64x1xi32>
    %25 = arith.cmpi slt, %23, %24 : vector<64x1xi32>
    %cst_7 = arith.constant 5.000000e-01 : f32
    %26 = vector.broadcast %cst_7 : f32 to vector<64x1xf32>
    %27 = arith.cmpf ogt, %12, %26 : vector<64x1xf32>
    %28 = arith.andi %27, %25 : vector<64x1xi1>
    %29 = arith.extui %28 : vector<64x1xi1> to vector<64x1xi32>
    %30 = arith.sitofp %29 : vector<64x1xi32> to vector<64x1xf32>
    %31 = vector.broadcast %19 : vector<64x1xi32> to vector<64x16xi32>
    %32 = arith.cmpi eq, %13, %31 : vector<64x16xi32>
    %33 = arith.extui %32 : vector<64x16xi1> to vector<64x16xi32>
    %34 = arith.sitofp %33 : vector<64x16xi32> to vector<64x16xf32>
    %cst_8 = arith.constant dense<0xFF800000> : vector<64xf32>
    %35 = vector.multi_reduction <maximumf>, %4, %cst_8 [1] : vector<64x16xf32> to vector<64xf32>
    %36 = vector.shape_cast %35 : vector<64xf32> to vector<64x1xf32>
    %37 = vector.broadcast %36 : vector<64x1xf32> to vector<64x16xf32>
    %38 = arith.subf %4, %37 : vector<64x16xf32>
    %39 = math.exp %38 : vector<64x16xf32>
    %cst_9 = arith.constant dense<0.000000e+00> : vector<64xf32>
    %40 = vector.multi_reduction <add>, %39, %cst_9 [1] : vector<64x16xf32> to vector<64xf32>
    %41 = vector.shape_cast %40 : vector<64xf32> to vector<64x1xf32>
    %42 = math.log %41 : vector<64x1xf32>
    %43 = vector.broadcast %42 : vector<64x1xf32> to vector<64x16xf32>
    %44 = arith.subf %38, %43 : vector<64x16xf32>
    %45 = arith.mulf %34, %44 : vector<64x16xf32>
    %cst_10 = arith.constant dense<0.000000e+00> : vector<64xf32>
    %46 = vector.multi_reduction <add>, %45, %cst_10 [1] : vector<64x16xf32> to vector<64xf32>
    %47 = vector.shape_cast %46 : vector<64xf32> to vector<64x1xf32>
    %cst_11 = arith.constant 0.000000e+00 : f32
    %48 = vector.broadcast %cst_11 : f32 to vector<64x1xf32>
    %49 = arith.subf %48, %47 : vector<64x1xf32>
    %50 = vector.broadcast %30 : vector<64x1xf32> to vector<64x16xf32>
    %51 = arith.mulf %34, %50 : vector<64x16xf32>
    %c0_12 = arith.constant 0 : index
    %c0_13 = arith.constant 0 : index
    %52 = vector.load %arg5[%c0_12, %c0_13] : memref<1x16xf32, #tpu.memory_space<vmem>>, vector<1x16xf32>
    %cst_14 = arith.constant dense<0.000000e+00> : vector<16xf32>
    %53 = vector.multi_reduction <add>, %51, %cst_14 [0] : vector<64x16xf32> to vector<16xf32>
    %54 = vector.shape_cast %53 : vector<16xf32> to vector<1x16xf32>
    %55 = arith.addf %52, %54 : vector<1x16xf32>
    %c0_15 = arith.constant 0 : index
    %c0_16 = arith.constant 0 : index
    %56 = vector.load %arg5[%c0_15, %c0_16] : memref<1x16xf32, #tpu.memory_space<vmem>>, vector<1x16xf32>
    tpu.vector_store %arg5[%c0_15, %c0_16], %55 {strides = array<i32>} : memref<1x16xf32, #tpu.memory_space<vmem>>, vector<1x16xf32>,
    %c0_17 = arith.constant 0 : index
    %c0_18 = arith.constant 0 : index
    %57 = vector.load %arg6[%c0_17, %c0_18] : memref<1x16xf32, #tpu.memory_space<vmem>>, vector<1x16xf32>
    %58 = vector.broadcast %49 : vector<64x1xf32> to vector<64x16xf32>
    %59 = arith.mulf %51, %58 : vector<64x16xf32>
    %cst_19 = arith.constant dense<0.000000e+00> : vector<16xf32>
    %60 = vector.multi_reduction <add>, %59, %cst_19 [0] : vector<64x16xf32> to vector<16xf32>
    %61 = vector.shape_cast %60 : vector<16xf32> to vector<1x16xf32>
    %62 = arith.addf %57, %61 : vector<1x16xf32>
    %c0_20 = arith.constant 0 : index
    %c0_21 = arith.constant 0 : index
    %63 = vector.load %arg6[%c0_20, %c0_21] : memref<1x16xf32, #tpu.memory_space<vmem>>, vector<1x16xf32>
    tpu.vector_store %arg6[%c0_20, %c0_21], %62 {strides = array<i32>} : memref<1x16xf32, #tpu.memory_space<vmem>>, vector<1x16xf32>,
    %c0_i32_22 = arith.constant 0 : i32
    %64 = arith.cmpi eq, %arg0, %c0_i32_22 : i32
    %65 = arith.extui %64 : i1 to i32
    %c0_i32_23 = arith.constant 0 : i32
    %66 = arith.cmpi ne, %65, %c0_i32_23 : i32
    scf.if %66 {
      %c0_24 = arith.constant 0 : index
      %c0_25 = arith.constant 0 : index
      %67 = vector.load %arg5[%c0_24, %c0_25] : memref<1x16xf32, #tpu.memory_space<vmem>>, vector<1x16xf32>
      %c0_26 = arith.constant 0 : index
      %c0_27 = arith.constant 0 : index
      %68 = vector.load %arg6[%c0_26, %c0_27] : memref<1x16xf32, #tpu.memory_space<vmem>>, vector<1x16xf32>
      %69 = vector.shape_cast %67 : vector<1x16xf32> to vector<1x1x16xf32>
      %cst_28 = arith.constant dense<0.000000e+00> : vector<1xf32>
      %70 = vector.multi_reduction <add>, %69, %cst_28 [1, 2] : vector<1x1x16xf32> to vector<1xf32>
      %71 = vector.shape_cast %70 : vector<1xf32> to vector<1x1x1xf32>
      %72 = vector.extract %71[0, 0, 0] : f32 from vector<1x1x1xf32>
      %cst_29 = arith.constant 0.000000e+00 : f32
      %73 = vector.broadcast %cst_29 : f32 to vector<1x16xf32>
      %74 = arith.cmpf ogt, %67, %73 : vector<1x16xf32>
      %75 = arith.extui %74 : vector<1x16xi1> to vector<1x16xi32>
      %76 = arith.sitofp %75 : vector<1x16xi32> to vector<1x16xf32>
      %77 = vector.shape_cast %76 : vector<1x16xf32> to vector<1x1x16xf32>
      %cst_30 = arith.constant dense<0.000000e+00> : vector<1xf32>
      %78 = vector.multi_reduction <add>, %77, %cst_30 [1, 2] : vector<1x1x16xf32> to vector<1xf32>
      %79 = vector.shape_cast %78 : vector<1xf32> to vector<1x1x1xf32>
      %80 = vector.extract %79[0, 0, 0] : f32 from vector<1x1x1xf32>
      %cst_31 = arith.constant 1.000000e+00 : f32
      %81 = vector.broadcast %cst_31 : f32 to vector<1x16xf32>
      %82 = arith.maximumf %67, %81 : vector<1x16xf32>
      %83 = arith.divf %68, %82 : vector<1x16xf32>
      %cst_32 = arith.constant 0.000000e+00 : f32
      %84 = vector.broadcast %cst_32 : f32 to vector<1x16xf32>
      %85 = arith.select %74, %83, %84 : vector<1x16xi1>, vector<1x16xf32>
      %86 = vector.shape_cast %85 : vector<1x16xf32> to vector<1x1x16xf32>
      %cst_33 = arith.constant dense<0.000000e+00> : vector<1xf32>
      %87 = vector.multi_reduction <add>, %86, %cst_33 [1, 2] : vector<1x1x16xf32> to vector<1xf32>
      %88 = vector.shape_cast %87 : vector<1xf32> to vector<1x1x1xf32>
      %89 = vector.extract %88[0, 0, 0] : f32 from vector<1x1x1xf32>
      %90 = arith.divf %89, %80 : f32
      %c0_34 = arith.constant 0 : index
      %c0_35 = arith.constant 0 : index
      %91 = memref.load %arg3[%c0_34, %c0_35] : memref<1x1xf32, #tpu.memory_space<smem>>
      memref.store %90, %arg3[%c0_34, %c0_35] : memref<1x1xf32, #tpu.memory_space<smem>>
      %c0_36 = arith.constant 0 : index
      %c0_37 = arith.constant 0 : index
      %92 = memref.load %arg4[%c0_36, %c0_37] : memref<1x1xf32, #tpu.memory_space<smem>>
      memref.store %72, %arg4[%c0_36, %c0_37] : memref<1x1xf32, #tpu.memory_space<smem>>
    } else {
    }
    return
  }
  func.func @transform_0(%arg0: i32) -> (i32, i32) {
    %c0_i32 = arith.constant 0 : i32
    %c0_i32_0 = arith.constant 0 : i32
    return %arg0, %c0_i32 : i32, i32
  }
  func.func @transform_1(%arg0: i32) -> (i32, i32) {
    %c0_i32 = arith.constant 0 : i32
    %c0_i32_0 = arith.constant 0 : i32
    return %arg0, %c0_i32 : i32, i32
  }
  func.func @transform_2(%arg0: i32) -> (i32, i32) {
    %c0_i32 = arith.constant 0 : i32
    %c0_i32_0 = arith.constant 0 : i32
    %c0_i32_1 = arith.constant 0 : i32
    return %c0_i32, %c0_i32_0 : i32, i32
  }
  func.func @transform_3(%arg0: i32) -> (i32, i32) {
    %c0_i32 = arith.constant 0 : i32
    %c0_i32_0 = arith.constant 0 : i32
    %c0_i32_1 = arith.constant 0 : i32
    return %c0_i32, %c0_i32_0 : i32, i32
  }
}

</mosaic_0001>

<llo_original>
// kernel: tpu_custom_call.1
$region0: #{tpu_custom_call.1}
  #allocation0 [shape = 'u32[]', space=smem, size = 0x4, offset = 0x4, fixed_abs, tag = 'smem constant byte address 0x4 - core index']
  #allocation1 [shape = 'u32[72,128]{1,0:T(1,128)}', space=vmem, size = 0x9000, scoped, tag = 'internal scratch']
  #allocation2 [shape = 'f32[1,16]{1,0:T(1,128)}', space=vmem, size = 0x200, scoped, tag = 'scratch operand']
  #allocation3 [shape = 'f32[1,16]{1,0:T(1,128)}', space=vmem, size = 0x200, scoped, tag = 'scratch operand']
  %s0 = inlined_call_operand.vmem [shape: f32[64,16], index: 0, kind: input, shape index: {}]
  %s1 = inlined_call_operand.vmem [shape: f32[64,16], index: 1, kind: input, shape index: {}]
  %s2 = inlined_call_operand.hbm [shape: f32[1,1], index: 2, kind: output, shape index: {0}]
  %s3 = inlined_call_operand.hbm [shape: f32[1,1], index: 3, kind: output, shape index: {1}]
  %4 = xla_tuple %s2, %s3
  %s5 = sld [smem:[#allocation0]]
  $region34: #{tpu_custom_call.1} parent=0
    _
  %s7 = ssub.s32 1, %s5
  %s8 = scalar_select 0, %s7, %s5
  $region1: #{tpu_custom_call.1} parent=0
    #allocation4 [shape = 'u8[512]{0}', space=smem, size = 0x200, scoped, tag = 'output window, operand 0, single buffered']
    #allocation5 [shape = 's32[1]{0}', space=sflag, size = 0x4, scoped, tag = 'scoped memory for tpu_custom_call.1']
    #allocation6 [shape = 'u8[512]{0}', space=smem, size = 0x200, scoped, tag = 'output window, operand 1, single buffered']
    #allocation7 [shape = 's32[1]{0}', space=sflag, size = 0x4, scoped, tag = 'scoped memory for tpu_custom_call.1']
    %9 = vsyncpa [#allocation5], 0
    %10 = vsyncpa [#allocation7], 0
    // Predicated region
    $region2: #{tpu_custom_call.1} parent=1 // pred_check
      _
    $region3: #{tpu_custom_call.1} parent=1 // pred_check_branch
      %12 = sbr.rel (0) target = $region5
    $region4: #{tpu_custom_call.1} parent=1 // pred_region
      _
    $region5: #{tpu_custom_call.1} parent=1 // pred_fallthru
      _
    // Predicated region
    $region6: #{tpu_custom_call.1} parent=1 // pred_check
      _
    $region7: #{tpu_custom_call.1} parent=1 // pred_check_branch
      %14 = sbr.rel (0) target = $region9
    $region8: #{tpu_custom_call.1} parent=1 // pred_region
      _
    $region9: #{tpu_custom_call.1} parent=1 // pred_fallthru
      _
    %p15 = scmp.eq.s32.totalorder 0, 0
    // Predicated region
    $region10: #{tpu_custom_call.1} parent=1 // pred_check
      %p16 = pneg %p15
    $region11: #{tpu_custom_call.1} parent=1 // pred_check_branch
      %18 = sbr.rel (%p16) target = $region13
    $region12: #{tpu_custom_call.1} parent=1 // pred_region
      %vm19 = vcmask 122880
      %20 = vst.msk [vmem:[#allocation2] sm:$0x1] %vm19, 0.0
      %21 = vst.msk [vmem:[#allocation3] sm:$0x1] %vm19, 0.0
    $region13: #{tpu_custom_call.1} parent=1 // pred_fallthru
      _
    %v22 = vld [vmem:[%s0] sm:$0xff]
    %v23 = vld [vmem:[%s0 + $0x8] sm:$0xff]
    %v24 = vld [vmem:[%s0 + $0x10] sm:$0xff]
    %v25 = vld [vmem:[%s0 + $0x18] sm:$0xff]
    %v26 = vld [vmem:[%s0 + $0x20] sm:$0xff]
    %v27 = vld [vmem:[%s0 + $0x28] sm:$0xff]
    %v28 = vld [vmem:[%s0 + $0x30] sm:$0xff]
    %v29 = vld [vmem:[%s0 + $0x38] sm:$0xff]
    %v30 = vld [vmem:[%s1] sm:$0xff]
    %v31 = vld [vmem:[%s1 + $0x8] sm:$0xff]
    %v32 = vld [vmem:[%s1 + $0x10] sm:$0xff]
    %v33 = vld [vmem:[%s1 + $0x18] sm:$0xff]
    %v34 = vld [vmem:[%s1 + $0x20] sm:$0xff]
    %v35 = vld [vmem:[%s1 + $0x28] sm:$0xff]
    %v36 = vld [vmem:[%s1 + $0x30] sm:$0xff]
    %v37 = vld [vmem:[%s1 + $0x38] sm:$0xff]
    %vm38 = vcmask 130048
    %v39 = vsel %vm38, %v22, -inf
    %40 = vmax.xlane.f32.xlu0 %v39
    %v41 = vpop.xlane.xlu0 %40
    %v42 = vsel %vm38, %v23, -inf
    %43 = vmax.xlane.f32.xlu0 %v42
    %v44 = vpop.xlane.xlu0 %43
    %v45 = vsel %vm38, %v24, -inf
    %46 = vmax.xlane.f32.xlu0 %v45
    %v47 = vpop.xlane.xlu0 %46
    %v48 = vsel %vm38, %v25, -inf
    %49 = vmax.xlane.f32.xlu0 %v48
    %v50 = vpop.xlane.xlu0 %49
    %v51 = vsel %vm38, %v26, -inf
    %52 = vmax.xlane.f32.xlu0 %v51
    %v53 = vpop.xlane.xlu0 %52
    %v54 = vsel %vm38, %v27, -inf
    %55 = vmax.xlane.f32.xlu0 %v54
    %v56 = vpop.xlane.xlu0 %55
    %v57 = vsel %vm38, %v28, -inf
    %58 = vmax.xlane.f32.xlu0 %v57
    %v59 = vpop.xlane.xlu0 %58
    %v60 = vsel %vm38, %v29, -inf
    %61 = vmax.xlane.f32.xlu0 %v60
    %v62 = vpop.xlane.xlu0 %61
    %v63 = vsub.f32 %v22, %v41
    %v64 = vsub.f32 %v23, %v44
    %v65 = vsub.f32 %v24, %v47
    %v66 = vsub.f32 %v25, %v50
    %v67 = vsub.f32 %v26, %v53
    %v68 = vsub.f32 %v27, %v56
    %v69 = vsub.f32 %v28, %v59
    %v70 = vsub.f32 %v29, %v62
    %v71 = vmul.f32 %v63, 1.442695
    %v72 = vpow.pop %v71
    %v73 = vmul.f32 %v64, 1.442695
    %v74 = vpow.pop %v73
    %v75 = vmul.f32 %v65, 1.442695
    %v76 = vpow.pop %v75
    %v77 = vmul.f32 %v66, 1.442695
    %v78 = vpow.pop %v77
    %v79 = vmul.f32 %v67, 1.442695
    %v80 = vpow.pop %v79
    %v81 = vmul.f32 %v68, 1.442695
    %v82 = vpow.pop %v81
    %v83 = vmul.f32 %v69, 1.442695
    %v84 = vpow.pop %v83
    %v85 = vmul.f32 %v70, 1.442695
    %v86 = vpow.pop %v85
    %v87 = vsel %vm38, %v72, 0.0
    %88 = vadd.xlane.f32.xlu0 %v87
    %v89 = vpop.xlane.xlu0 %88
    %v90 = vsel %vm38, %v74, 0.0
    %91 = vadd.xlane.f32.xlu0 %v90
    %v92 = vpop.xlane.xlu0 %91
    %v93 = vsel %vm38, %v76, 0.0
    %94 = vadd.xlane.f32.xlu0 %v93
    %v95 = vpop.xlane.xlu0 %94
    %v96 = vsel %vm38, %v78, 0.0
    %97 = vadd.xlane.f32.xlu0 %v96
    %v98 = vpop.xlane.xlu0 %97
    %v99 = vsel %vm38, %v80, 0.0
    %100 = vadd.xlane.f32.xlu0 %v99
    %v101 = vpop.xlane.xlu0 %100
    %v102 = vsel %vm38, %v82, 0.0
    %103 = vadd.xlane.f32.xlu0 %v102
    %v104 = vpop.xlane.xlu0 %103
    %v105 = vsel %vm38, %v84, 0.0
    %106 = vadd.xlane.f32.xlu0 %v105
    %v107 = vpop.xlane.xlu0 %106
    %v108 = vsel %vm38, %v86, 0.0
    %109 = vadd.xlane.f32.xlu0 %v108
    %v110 = vpop.xlane.xlu0 %109
    %v111 = vrcp.pop %v89
    %v112 = vmul.f32 %v89, %v111
    %v113 = vsub.f32 1.0, %v112
    %v114 = vmul.f32 %v111, %v113
    %v115 = vadd.f32 %v111, %v114
    %vm116 = vweird.f32 %v89
    %vm117 = vweird.f32 %v111
    %vm118 = vmor %vm116, %vm117
    %v119 = vsel %vm118, %v111, %v115
    %v120 = vand.u32 2147483647, %v89
    %vm121 = vcmp.eq.f32.partialorder %v120, 8.507059e+37
    %v122 = vand.u32 %v89, 2147483648
    %v123 = vor.u32 1.1754944e-38, %v122
    %v124 = vsel %vm121, %v123, %v119
    %v125 = vrcp.pop %v92
    %v126 = vmul.f32 %v92, %v125
    %v127 = vsub.f32 1.0, %v126
    %v128 = vmul.f32 %v125, %v127
    %v129 = vadd.f32 %v125, %v128
    %vm130 = vweird.f32 %v92
    %vm131 = vweird.f32 %v125
    %vm132 = vmor %vm130, %vm131
    %v133 = vsel %vm132, %v125, %v129
    %v134 = vand.u32 2147483647, %v92
    %vm135 = vcmp.eq.f32.partialorder %v134, 8.507059e+37
    %v136 = vand.u32 %v92, 2147483648
    %v137 = vor.u32 1.1754944e-38, %v136
    %v138 = vsel %vm135, %v137, %v133
    %v139 = vrcp.pop %v95
    %v140 = vmul.f32 %v95, %v139
    %v141 = vsub.f32 1.0, %v140
    %v142 = vmul.f32 %v139, %v141
    %v143 = vadd.f32 %v139, %v142
    %vm144 = vweird.f32 %v95
    %vm145 = vweird.f32 %v139
    %vm146 = vmor %vm144, %vm145
    %v147 = vsel %vm146, %v139, %v143
    %v148 = vand.u32 2147483647, %v95
    %vm149 = vcmp.eq.f32.partialorder %v148, 8.507059e+37
    %v150 = vand.u32 %v95, 2147483648
    %v151 = vor.u32 1.1754944e-38, %v150
    %v152 = vsel %vm149, %v151, %v147
    %v153 = vrcp.pop %v98
    %v154 = vmul.f32 %v98, %v153
    %v155 = vsub.f32 1.0, %v154
    %v156 = vmul.f32 %v153, %v155
    %v157 = vadd.f32 %v153, %v156
    %vm158 = vweird.f32 %v98
    %vm159 = vweird.f32 %v153
    %vm160 = vmor %vm158, %vm159
    %v161 = vsel %vm160, %v153, %v157
    %v162 = vand.u32 2147483647, %v98
    %vm163 = vcmp.eq.f32.partialorder %v162, 8.507059e+37
    %v164 = vand.u32 %v98, 2147483648
    %v165 = vor.u32 1.1754944e-38, %v164
    %v166 = vsel %vm163, %v165, %v161
    %v167 = vrcp.pop %v101
    %v168 = vmul.f32 %v101, %v167
    %v169 = vsub.f32 1.0, %v168
    %v170 = vmul.f32 %v167, %v169
    %v171 = vadd.f32 %v167, %v170
    %vm172 = vweird.f32 %v101
    %vm173 = vweird.f32 %v167
    %vm174 = vmor %vm172, %vm173
    %v175 = vsel %vm174, %v167, %v171
    %v176 = vand.u32 2147483647, %v101
    %vm177 = vcmp.eq.f32.partialorder %v176, 8.507059e+37
    %v178 = vand.u32 %v101, 2147483648
    %v179 = vor.u32 1.1754944e-38, %v178
    %v180 = vsel %vm177, %v179, %v175
    %v181 = vrcp.pop %v104
    %v182 = vmul.f32 %v104, %v181
    %v183 = vsub.f32 1.0, %v182
    %v184 = vmul.f32 %v181, %v183
    %v185 = vadd.f32 %v181, %v184
    %vm186 = vweird.f32 %v104
    %vm187 = vweird.f32 %v181
    %vm188 = vmor %vm186, %vm187
    %v189 = vsel %vm188, %v181, %v185
    %v190 = vand.u32 2147483647, %v104
    %vm191 = vcmp.eq.f32.partialorder %v190, 8.507059e+37
    %v192 = vand.u32 %v104, 2147483648
    %v193 = vor.u32 1.1754944e-38, %v192
    %v194 = vsel %vm191, %v193, %v189
    %v195 = vrcp.pop %v107
    %v196 = vmul.f32 %v107, %v195
    %v197 = vsub.f32 1.0, %v196
    %v198 = vmul.f32 %v195, %v197
    %v199 = vadd.f32 %v195, %v198
    %vm200 = vweird.f32 %v107
    %vm201 = vweird.f32 %v195
    %vm202 = vmor %vm200, %vm201
    %v203 = vsel %vm202, %v195, %v199
    %v204 = vand.u32 2147483647, %v107
    %vm205 = vcmp.eq.f32.partialorder %v204, 8.507059e+37
    %v206 = vand.u32 %v107, 2147483648
    %v207 = vor.u32 1.1754944e-38, %v206
    %v208 = vsel %vm205, %v207, %v203
    %v209 = vrcp.pop %v110
    %v210 = vmul.f32 %v110, %v209
    %v211 = vsub.f32 1.0, %v210
    %v212 = vmul.f32 %v209, %v211
    %v213 = vadd.f32 %v209, %v212
    %vm214 = vweird.f32 %v110
    %vm215 = vweird.f32 %v209
    %vm216 = vmor %vm214, %vm215
    %v217 = vsel %vm216, %v209, %v213
    %v218 = vand.u32 2147483647, %v110
    %vm219 = vcmp.eq.f32.partialorder %v218, 8.507059e+37
    %v220 = vand.u32 %v110, 2147483648
    %v221 = vor.u32 1.1754944e-38, %v220
    %v222 = vsel %vm219, %v221, %v217
    %v223 = vlaneseq
    %v224 = vand.u32 %v223, 127
    %vm225 = vcmp.eq.f32.partialorder %v22, %v41
    %vm226 = vcmp.eq.f32.partialorder %v23, %v44
    %vm227 = vcmp.eq.f32.partialorder %v24, %v47
    %vm228 = vcmp.eq.f32.partialorder %v25, %v50
    %vm229 = vcmp.eq.f32.partialorder %v26, %v53
    %vm230 = vcmp.eq.f32.partialorder %v27, %v56
    %vm231 = vcmp.eq.f32.partialorder %v28, %v59
    %vm232 = vcmp.eq.f32.partialorder %v29, %v62
    %v233 = vsel %vm225, %v224, 16
    %v234 = vsel %vm226, %v224, 16
    %v235 = vsel %vm227, %v224, 16
    %v236 = vsel %vm228, %v224, 16
    %v237 = vsel %vm229, %v224, 16
    %v238 = vsel %vm230, %v224, 16
    %v239 = vsel %vm231, %v224, 16
    %v240 = vsel %vm232, %v224, 16
    %v241 = vsel %vm38, %v233, 2147483647
    %v242 = vand.u32 %v241, 65535
    %v243 = vshra.s32 %v241, 16
    %v244 = vcvt.s32.f32 %v242
    %v245 = vcvt.s32.f32 %v243
    %246 = vmin.xlane.f32.xlu0 %v245
    %v247 = vpop.xlane.xlu0 %246
    %vm248 = vcmp.eq.f32.partialorder %v245, %v247
    %v249 = vsel %vm248, %v244, inf
    %250 = vmin.xlane.f32.xlu0 %v249
    %v251 = vpop.xlane.xlu0 %250
    %v252 = vcvt.f32.s32 %v251
    %v253 = vcvt.f32.s32 %v247
    %v254 = vshll.u32 %v253, 16
    %v255 = vadd.s32 %v254, %v252
    %v256 = vsel %vm38, %v234, 2147483647
    %v257 = vand.u32 %v256, 65535
    %v258 = vshra.s32 %v256, 16
    %v259 = vcvt.s32.f32 %v257
    %v260 = vcvt.s32.f32 %v258
    %261 = vmin.xlane.f32.xlu0 %v260
    %v262 = vpop.xlane.xlu0 %261
    %vm263 = vcmp.eq.f32.partialorder %v260, %v262
    %v264 = vsel %vm263, %v259, inf
    %265 = vmin.xlane.f32.xlu0 %v264
    %v266 = vpop.xlane.xlu0 %265
    %v267 = vcvt.f32.s32 %v266
    %v268 = vcvt.f32.s32 %v262
    %v269 = vshll.u32 %v268, 16
    %v270 = vadd.s32 %v269, %v267
    %v271 = vsel %vm38, %v235, 2147483647
    %v272 = vand.u32 %v271, 65535
    %v273 = vshra.s32 %v271, 16
    %v274 = vcvt.s32.f32 %v272
    %v275 = vcvt.s32.f32 %v273
    %276 = vmin.xlane.f32.xlu0 %v275
    %v277 = vpop.xlane.xlu0 %276
    %vm278 = vcmp.eq.f32.partialorder %v275, %v277
    %v279 = vsel %vm278, %v274, inf
    %280 = vmin.xlane.f32.xlu0 %v279
    %v281 = vpop.xlane.xlu0 %280
    %v282 = vcvt.f32.s32 %v281
    %v283 = vcvt.f32.s32 %v277
    %v284 = vshll.u32 %v283, 16
    %v285 = vadd.s32 %v284, %v282
    %v286 = vsel %vm38, %v236, 2147483647
    %v287 = vand.u32 %v286, 65535
    %v288 = vshra.s32 %v286, 16
    %v289 = vcvt.s32.f32 %v287
    %v290 = vcvt.s32.f32 %v288
    %291 = vmin.xlane.f32.xlu0 %v290
    %v292 = vpop.xlane.xlu0 %291
    %vm293 = vcmp.eq.f32.partialorder %v290, %v292
    %v294 = vsel %vm293, %v289, inf
    %295 = vmin.xlane.f32.xlu0 %v294
    %v296 = vpop.xlane.xlu0 %295
    %v297 = vcvt.f32.s32 %v296
    %v298 = vcvt.f32.s32 %v292
    %v299 = vshll.u32 %v298, 16
    %v300 = vadd.s32 %v299, %v297
    %v301 = vsel %vm38, %v237, 2147483647
    %v302 = vand.u32 %v301, 65535
    %v303 = vshra.s32 %v301, 16
    %v304 = vcvt.s32.f32 %v302
    %v305 = vcvt.s32.f32 %v303
    %306 = vmin.xlane.f32.xlu0 %v305
    %v307 = vpop.xlane.xlu0 %306
    %vm308 = vcmp.eq.f32.partialorder %v305, %v307
    %v309 = vsel %vm308, %v304, inf
    %310 = vmin.xlane.f32.xlu0 %v309
    %v311 = vpop.xlane.xlu0 %310
    %v312 = vcvt.f32.s32 %v311
    %v313 = vcvt.f32.s32 %v307
    %v314 = vshll.u32 %v313, 16
    %v315 = vadd.s32 %v314, %v312
    %v316 = vsel %vm38, %v238, 2147483647
    %v317 = vand.u32 %v316, 65535
    %v318 = vshra.s32 %v316, 16
    %v319 = vcvt.s32.f32 %v317
    %v320 = vcvt.s32.f32 %v318
    %321 = vmin.xlane.f32.xlu0 %v320
    %v322 = vpop.xlane.xlu0 %321
    %vm323 = vcmp.eq.f32.partialorder %v320, %v322
    %v324 = vsel %vm323, %v319, inf
    %325 = vmin.xlane.f32.xlu0 %v324
    %v326 = vpop.xlane.xlu0 %325
    %v327 = vcvt.f32.s32 %v326
    %v328 = vcvt.f32.s32 %v322
    %v329 = vshll.u32 %v328, 16
    %v330 = vadd.s32 %v329, %v327
    %v331 = vsel %vm38, %v239, 2147483647
    %v332 = vand.u32 %v331, 65535
    %v333 = vshra.s32 %v331, 16
    %v334 = vcvt.s32.f32 %v332
    %v335 = vcvt.s32.f32 %v333
    %336 = vmin.xlane.f32.xlu0 %v335
    %v337 = vpop.xlane.xlu0 %336
    %vm338 = vcmp.eq.f32.partialorder %v335, %v337
    %v339 = vsel %vm338, %v334, inf
    %340 = vmin.xlane.f32.xlu0 %v339
    %v341 = vpop.xlane.xlu0 %340
    %v342 = vcvt.f32.s32 %v341
    %v343 = vcvt.f32.s32 %v337
    %v344 = vshll.u32 %v343, 16
    %v345 = vadd.s32 %v344, %v342
    %v346 = vsel %vm38, %v240, 2147483647
    %v347 = vand.u32 %v346, 65535
    %v348 = vshra.s32 %v346, 16
    %v349 = vcvt.s32.f32 %v347
    %v350 = vcvt.s32.f32 %v348
    %351 = vmin.xlane.f32.xlu0 %v350
    %v352 = vpop.xlane.xlu0 %351
    %vm353 = vcmp.eq.f32.partialorder %v350, %v352
    %v354 = vsel %vm353, %v349, inf
    %355 = vmin.xlane.f32.xlu0 %v354
    %v356 = vpop.xlane.xlu0 %355
    %v357 = vcvt.f32.s32 %v356
    %v358 = vcvt.f32.s32 %v352
    %v359 = vshll.u32 %v358, 16
    %v360 = vadd.s32 %v359, %v357
    %v361 = vlaneseq
    %v362 = vshrl.u32 %v361, 7
    %v363 = vadd.s32 %v362, 8
    %v364 = vadd.s32 %v362, 16
    %v365 = vadd.s32 %v362, 24
    %v366 = vadd.s32 %v362, 32
    %v367 = vadd.s32 %v362, 40
    %v368 = vadd.s32 %v362, 48
    %v369 = vadd.s32 %v362, 56
    %s370 = smul.u32 0, 64
    %v371 = vstv %s370
    %v372 = vadd.s32 %v371, %v362
    %v373 = vadd.s32 %v371, %v363
    %v374 = vadd.s32 %v371, %v364
    %v375 = vadd.s32 %v371, %v365
    %v376 = vadd.s32 %v371, %v366
    %v377 = vadd.s32 %v371, %v367
    %v378 = vadd.s32 %v371, %v368
    %v379 = vadd.s32 %v371, %v369
    %vm380 = vcmp.lt.s32.totalorder %v372, 64
    %vm381 = vcmp.lt.s32.totalorder %v373, 64
    %vm382 = vcmp.lt.s32.totalorder %v374, 64
    %vm383 = vcmp.lt.s32.totalorder %v375, 64
    %vm384 = vcmp.lt.s32.totalorder %v376, 64
    %vm385 = vcmp.lt.s32.totalorder %v377, 64
    %vm386 = vcmp.lt.s32.totalorder %v378, 64
    %vm387 = vcmp.lt.s32.totalorder %v379, 64
    %vm388 = vcmp.gt.f32.partialorder %v124, 0.5
    %vm389 = vcmp.gt.f32.partialorder %v138, 0.5
    %vm390 = vcmp.gt.f32.partialorder %v152, 0.5
    %vm391 = vcmp.gt.f32.partialorder %v166, 0.5
    %vm392 = vcmp.gt.f32.partialorder %v180, 0.5
    %vm393 = vcmp.gt.f32.partialorder %v194, 0.5
    %vm394 = vcmp.gt.f32.partialorder %v208, 0.5
    %vm395 = vcmp.gt.f32.partialorder %v222, 0.5
    %vm396 = vmand %vm388, %vm380
    %vm397 = vmand %vm389, %vm381
    %vm398 = vmand %vm390, %vm382
    %vm399 = vmand %vm391, %vm383
    %vm400 = vmand %vm392, %vm384
    %vm401 = vmand %vm393, %vm385
    %vm402 = vmand %vm394, %vm386
    %vm403 = vmand %vm395, %vm387
    %v404 = vsel %vm396, 1, 0
    %v405 = vsel %vm397, 1, 0
    %v406 = vsel %vm398, 1, 0
    %v407 = vsel %vm399, 1, 0
    %v408 = vsel %vm400, 1, 0
    %v409 = vsel %vm401, 1, 0
    %v410 = vsel %vm402, 1, 0
    %v411 = vsel %vm403, 1, 0
    %v412 = vcvt.s32.f32 %v404
    %v413 = vcvt.s32.f32 %v405
    %v414 = vcvt.s32.f32 %v406
    %v415 = vcvt.s32.f32 %v407
    %v416 = vcvt.s32.f32 %v408
    %v417 = vcvt.s32.f32 %v409
    %v418 = vcvt.s32.f32 %v410
    %v419 = vcvt.s32.f32 %v411
    %vm420 = vcmp.eq.s32.totalorder %v224, %v255
    %vm421 = vcmp.eq.s32.totalorder %v224, %v270
    %vm422 = vcmp.eq.s32.totalorder %v224, %v285
    %vm423 = vcmp.eq.s32.totalorder %v224, %v300
    %vm424 = vcmp.eq.s32.totalorder %v224, %v315
    %vm425 = vcmp.eq.s32.totalorder %v224, %v330
    %vm426 = vcmp.eq.s32.totalorder %v224, %v345
    %vm427 = vcmp.eq.s32.totalorder %v224, %v360
    %v428 = vsel %vm420, 1, 0
    %v429 = vsel %vm421, 1, 0
    %v430 = vsel %vm422, 1, 0
    %v431 = vsel %vm423, 1, 0
    %v432 = vsel %vm424, 1, 0
    %v433 = vsel %vm425, 1, 0
    %v434 = vsel %vm426, 1, 0
    %v435 = vsel %vm427, 1, 0
    %v436 = vcvt.s32.f32 %v428
    %v437 = vcvt.s32.f32 %v429
    %v438 = vcvt.s32.f32 %v430
    %v439 = vcvt.s32.f32 %v431
    %v440 = vcvt.s32.f32 %v432
    %v441 = vcvt.s32.f32 %v433
    %v442 = vcvt.s32.f32 %v434
    %v443 = vcvt.s32.f32 %v435
    %v444 = vsel %vm38, %v30, -inf
    %445 = vmax.xlane.f32.xlu0 %v444
    %v446 = vpop.xlane.xlu0 %445
    %v447 = vsel %vm38, %v31, -inf
    %448 = vmax.xlane.f32.xlu0 %v447
    %v449 = vpop.xlane.xlu0 %448
    %v450 = vsel %vm38, %v32, -inf
    %451 = vmax.xlane.f32.xlu0 %v450
    %v452 = vpop.xlane.xlu0 %451
    %v453 = vsel %vm38, %v33, -inf
    %454 = vmax.xlane.f32.xlu0 %v453
    %v455 = vpop.xlane.xlu0 %454
    %v456 = vsel %vm38, %v34, -inf
    %457 = vmax.xlane.f32.xlu0 %v456
    %v458 = vpop.xlane.xlu0 %457
    %v459 = vsel %vm38, %v35, -inf
    %460 = vmax.xlane.f32.xlu0 %v459
    %v461 = vpop.xlane.xlu0 %460
    %v462 = vsel %vm38, %v36, -inf
    %463 = vmax.xlane.f32.xlu0 %v462
    %v464 = vpop.xlane.xlu0 %463
    %v465 = vsel %vm38, %v37, -inf
    %466 = vmax.xlane.f32.xlu0 %v465
    %v467 = vpop.xlane.xlu0 %466
    %v468 = vsub.f32 %v30, %v446
    %v469 = vsub.f32 %v31, %v449
    %v470 = vsub.f32 %v32, %v452
    %v471 = vsub.f32 %v33, %v455
    %v472 = vsub.f32 %v34, %v458
    %v473 = vsub.f32 %v35, %v461
    %v474 = vsub.f32 %v36, %v464
    %v475 = vsub.f32 %v37, %v467
    %v476 = vmul.f32 %v468, 1.442695
    %v477 = vpow.pop %v476
    %v478 = vmul.f32 %v469, 1.442695
    %v479 = vpow.pop %v478
    %v480 = vmul.f32 %v470, 1.442695
    %v481 = vpow.pop %v480
    %v482 = vmul.f32 %v471, 1.442695
    %v483 = vpow.pop %v482
    %v484 = vmul.f32 %v472, 1.442695
    %v485 = vpow.pop %v484
    %v486 = vmul.f32 %v473, 1.442695
    %v487 = vpow.pop %v486
    %v488 = vmul.f32 %v474, 1.442695
    %v489 = vpow.pop %v488
    %v490 = vmul.f32 %v475, 1.442695
    %v491 = vpow.pop %v490
    %v492 = vsel %vm38, %v477, 0.0
    %493 = vadd.xlane.f32.xlu0 %v492
    %v494 = vpop.xlane.xlu0 %493
    %v495 = vsel %vm38, %v479, 0.0
    %496 = vadd.xlane.f32.xlu0 %v495
    %v497 = vpop.xlane.xlu0 %496
    %v498 = vsel %vm38, %v481, 0.0
    %499 = vadd.xlane.f32.xlu0 %v498
    %v500 = vpop.xlane.xlu0 %499
    %v501 = vsel %vm38, %v483, 0.0
    %502 = vadd.xlane.f32.xlu0 %v501
    %v503 = vpop.xlane.xlu0 %502
    %v504 = vsel %vm38, %v485, 0.0
    %505 = vadd.xlane.f32.xlu0 %v504
    %v506 = vpop.xlane.xlu0 %505
    %v507 = vsel %vm38, %v487, 0.0
    %508 = vadd.xlane.f32.xlu0 %v507
    %v509 = vpop.xlane.xlu0 %508
    %v510 = vsel %vm38, %v489, 0.0
    %511 = vadd.xlane.f32.xlu0 %v510
    %v512 = vpop.xlane.xlu0 %511
    %v513 = vsel %vm38, %v491, 0.0
    %514 = vadd.xlane.f32.xlu0 %v513
    %v515 = vpop.xlane.xlu0 %514
    %v516 = vlog2.pop %v494
    %v517 = vmul.f32 %v516, 0.6931472
    %v518 = vlog2.pop %v497
    %v519 = vmul.f32 %v518, 0.6931472
    %v520 = vlog2.pop %v500
    %v521 = vmul.f32 %v520, 0.6931472
    %v522 = vlog2.pop %v503
    %v523 = vmul.f32 %v522, 0.6931472
    %v524 = vlog2.pop %v506
    %v525 = vmul.f32 %v524, 0.6931472
    %v526 = vlog2.pop %v509
    %v527 = vmul.f32 %v526, 0.6931472
    %v528 = vlog2.pop %v512
    %v529 = vmul.f32 %v528, 0.6931472
    %v530 = vlog2.pop %v515
    %v531 = vmul.f32 %v530, 0.6931472
    %v532 = vsub.f32 %v468, %v517
    %v533 = vsub.f32 %v469, %v519
    %v534 = vsub.f32 %v470, %v521
    %v535 = vsub.f32 %v471, %v523
    %v536 = vsub.f32 %v472, %v525
    %v537 = vsub.f32 %v473, %v527
    %v538 = vsub.f32 %v474, %v529
    %v539 = vsub.f32 %v475, %v531
    %v540 = vmul.f32 %v436, %v532
    %v541 = vmul.f32 %v437, %v533
    %v542 = vmul.f32 %v438, %v534
    %v543 = vmul.f32 %v439, %v535
    %v544 = vmul.f32 %v440, %v536
    %v545 = vmul.f32 %v441, %v537
    %v546 = vmul.f32 %v442, %v538
    %v547 = vmul.f32 %v443, %v539
    %v548 = vsel %vm38, %v540, 0.0
    %549 = vadd.xlane.f32.xlu0 %v548
    %v550 = vpop.xlane.xlu0 %549
    %v551 = vsel %vm38, %v541, 0.0
    %552 = vadd.xlane.f32.xlu0 %v551
    %v553 = vpop.xlane.xlu0 %552
    %v554 = vsel %vm38, %v542, 0.0
    %555 = vadd.xlane.f32.xlu0 %v554
    %v556 = vpop.xlane.xlu0 %555
    %v557 = vsel %vm38, %v543, 0.0
    %558 = vadd.xlane.f32.xlu0 %v557
    %v559 = vpop.xlane.xlu0 %558
    %v560 = vsel %vm38, %v544, 0.0
    %561 = vadd.xlane.f32.xlu0 %v560
    %v562 = vpop.xlane.xlu0 %561
    %v563 = vsel %vm38, %v545, 0.0
    %564 = vadd.xlane.f32.xlu0 %v563
    %v565 = vpop.xlane.xlu0 %564
    %v566 = vsel %vm38, %v546, 0.0
    %567 = vadd.xlane.f32.xlu0 %v566
    %v568 = vpop.xlane.xlu0 %567
    %v569 = vsel %vm38, %v547, 0.0
    %570 = vadd.xlane.f32.xlu0 %v569
    %v571 = vpop.xlane.xlu0 %570
    %v572 = vsub.f32 0.0, %v550
    %v573 = vsub.f32 0.0, %v553
    %v574 = vsub.f32 0.0, %v556
    %v575 = vsub.f32 0.0, %v559
    %v576 = vsub.f32 0.0, %v562
    %v577 = vsub.f32 0.0, %v565
    %v578 = vsub.f32 0.0, %v568
    %v579 = vsub.f32 0.0, %v571
    %v580 = vmul.f32 %v436, %v412
    %v581 = vmul.f32 %v437, %v413
    %v582 = vmul.f32 %v438, %v414
    %v583 = vmul.f32 %v439, %v415
    %v584 = vmul.f32 %v440, %v416
    %v585 = vmul.f32 %v441, %v417
    %v586 = vmul.f32 %v442, %v418
    %v587 = vmul.f32 %v443, %v419
    %v588 = vld [vmem:[#allocation2] sm:$0x1]
    %v589 = vsel %vm38, %v580, 0.0
    %v590 = vsel %vm38, %v581, 0.0
    %v591 = vadd.f32 %v589, %v590
    %v592 = vsel %vm38, %v582, 0.0
    %v593 = vadd.f32 %v591, %v592
    %v594 = vsel %vm38, %v583, 0.0
    %v595 = vadd.f32 %v593, %v594
    %v596 = vsel %vm38, %v584, 0.0
    %v597 = vadd.f32 %v595, %v596
    %v598 = vsel %vm38, %v585, 0.0
    %v599 = vadd.f32 %v597, %v598
    %v600 = vsel %vm38, %v586, 0.0
    %v601 = vadd.f32 %v599, %v600
    %v602 = vsel %vm38, %v587, 0.0
    %v603 = vadd.f32 %v601, %v602
    %v604 = vrot.slane %v603, 4
    %v605 = vadd.f32 %v603, %v604
    %v606 = vrot.slane %v605, 2
    %v607 = vadd.f32 %v605, %v606
    %v608 = vrot.slane %v607, 1
    %v609 = vadd.f32 %v607, %v608
    %v610 = vadd.f32 %v588, %v609
    %vm611 = vcmask 122880
    %612 = vst.msk [vmem:[#allocation2] sm:$0x1] %vm611, %v610
    %v613 = vld [vmem:[#allocation3] sm:$0x1]
    %v614 = vmul.f32 %v580, %v572
    %v615 = vmul.f32 %v581, %v573
    %v616 = vmul.f32 %v582, %v574
    %v617 = vmul.f32 %v583, %v575
    %v618 = vmul.f32 %v584, %v576
    %v619 = vmul.f32 %v585, %v577
    %v620 = vmul.f32 %v586, %v578
    %v621 = vmul.f32 %v587, %v579
    %v622 = vsel %vm38, %v614, 0.0
    %v623 = vsel %vm38, %v615, 0.0
    %v624 = vadd.f32 %v622, %v623
    %v625 = vsel %vm38, %v616, 0.0
    %v626 = vadd.f32 %v624, %v625
    %v627 = vsel %vm38, %v617, 0.0
    %v628 = vadd.f32 %v626, %v627
    %v629 = vsel %vm38, %v618, 0.0
    %v630 = vadd.f32 %v628, %v629
    %v631 = vsel %vm38, %v619, 0.0
    %v632 = vadd.f32 %v630, %v631
    %v633 = vsel %vm38, %v620, 0.0
    %v634 = vadd.f32 %v632, %v633
    %v635 = vsel %vm38, %v621, 0.0
    %v636 = vadd.f32 %v634, %v635
    %v637 = vrot.slane %v636, 4
    %v638 = vadd.f32 %v636, %v637
    %v639 = vrot.slane %v638, 2
    %v640 = vadd.f32 %v638, %v639
    %v641 = vrot.slane %v640, 1
    %v642 = vadd.f32 %v640, %v641
    %v643 = vadd.f32 %v613, %v642
    %644 = vst.msk [vmem:[#allocation3] sm:$0x1] %vm611, %v643
    // Predicated region
    $region14: #{tpu_custom_call.1} parent=1 // pred_check
      %p645 = pneg %p15
    $region15: #{tpu_custom_call.1} parent=1 // pred_check_branch
      %647 = sbr.rel (%p645) target = $region17
    $region16: #{tpu_custom_call.1} parent=1 // pred_region
      %v648 = vld [vmem:[#allocation2] sm:$0x1]
      %v649 = vld [vmem:[#allocation3] sm:$0x1]
      %v650 = vsel %vm611, %v648, 0.0
      %651 = vadd.xlane.f32.xlu0 %v650
      %v652 = vpop.xlane.xlu0 %651
      %v653 = vrot.slane %v652, 4
      %v654 = vadd.f32 %v652, %v653
      %v655 = vrot.slane %v654, 2
      %v656 = vadd.f32 %v654, %v655
      %v657 = vrot.slane %v656, 1
      %v658 = vadd.f32 %v656, %v657
      %s659 = vtos %v658
      %vm660 = vcmp.gt.f32.partialorder %v648, 0.0
      %v661 = vsel %vm660, 1, 0
      %v662 = vcvt.s32.f32 %v661
      %v663 = vsel %vm611, %v662, 0.0
      %664 = vadd.xlane.f32.xlu0 %v663
      %v665 = vpop.xlane.xlu0 %664
      %v666 = vrot.slane %v665, 4
      %v667 = vadd.f32 %v665, %v666
      %v668 = vrot.slane %v667, 2
      %v669 = vadd.f32 %v667, %v668
      %v670 = vrot.slane %v669, 1
      %v671 = vadd.f32 %v669, %v670
      %s672 = vtos %v671
      %v673 = vmax.f32 %v648, 1.0
      %v674 = vrcp.pop %v673
      %v675 = vmul.f32 %v673, %v674
      %v676 = vsub.f32 1.0, %v675
      %v677 = vmul.f32 %v674, %v676
      %v678 = vadd.f32 %v674, %v677
      %vm679 = vweird.f32 %v673
      %vm680 = vweird.f32 %v674
      %vm681 = vmor %vm679, %vm680
      %v682 = vsel %vm681, %v674, %v678
      %v683 = vand.u32 2147483647, %v673
      %vm684 = vcmp.eq.f32.partialorder %v683, 8.507059e+37
      %v685 = vand.u32 %v673, 2147483648
      %v686 = vor.u32 1.1754944e-38, %v685
      %v687 = vsel %vm684, %v686, %v682
      %v688 = vmul.f32 %v649, %v687
      %v689 = vsel %vm660, %v688, 0.0
      %v690 = vsel %vm611, %v689, 0.0
      %691 = vadd.xlane.f32.xlu0 %v690
      %v692 = vpop.xlane.xlu0 %691
      %v693 = vrot.slane %v692, 4
      %v694 = vadd.f32 %v692, %v693
      %v695 = vrot.slane %v694, 2
      %v696 = vadd.f32 %v694, %v695
      %v697 = vrot.slane %v696, 1
      %v698 = vadd.f32 %v696, %v697
      %s699 = vtos %v698
      %v700 = vstv %s672
      %v701 = vrcp.pop %v700
      %v702 = vmul.f32 %v700, %v701
      %v703 = vsub.f32 1.0, %v702
      %v704 = vmul.f32 %v701, %v703
      %v705 = vadd.f32 %v701, %v704
      %vm706 = vweird.f32 %v700
      %vm707 = vweird.f32 %v701
      %vm708 = vmor %vm706, %vm707
      %v709 = vsel %vm708, %v701, %v705
      %v710 = vand.u32 2147483647, %v700
      %vm711 = vcmp.eq.f32.partialorder %v710, 8.507059e+37
      %v712 = vand.u32 %v700, 2147483648
      %v713 = vor.u32 1.1754944e-38, %v712
      %v714 = vsel %vm711, %v713, %v709
      %s715 = vtos %v714
      %s716 = smul.f32 %s699, %s715
      %s717 = scalar_lea.smem [#allocation4], 0
      %718 = sst [smem:[%s717]] %s716
      %s719 = scalar_lea.smem [#allocation6], 0
      %720 = sst [smem:[%s719]] %s659
    $region17: #{tpu_custom_call.1} parent=1 // pred_fallthru
      _
    // Predicated region
    $region18: #{tpu_custom_call.1} parent=1 // pred_check
      _
    $region19: #{tpu_custom_call.1} parent=1 // pred_check_branch
      %722 = sbr.rel (0) target = $region21
    $region20: #{tpu_custom_call.1} parent=1 // pred_region
      %724 = vsyncadd [#allocation5], 0
      %s726 = sshll.u32 %s2, 4
      %s727 = int_to_ptr.hbm [resolvable:$true] %s726
      %729 = dma.smem_to_hbm [#allocation4], 16, %s727, [#allocation5]
    $region21: #{tpu_custom_call.1} parent=1 // pred_fallthru
      _
    // Predicated region
    $region22: #{tpu_custom_call.1} parent=1 // pred_check
      _
    $region23: #{tpu_custom_call.1} parent=1 // pred_check_branch
      %731 = sbr.rel (0) target = $region25
    $region24: #{tpu_custom_call.1} parent=1 // pred_region
      %733 = vsyncadd [#allocation7], 0
      %s735 = sshll.u32 %s3, 4
      %s736 = int_to_ptr.hbm [resolvable:$true] %s735
      %738 = dma.smem_to_hbm [#allocation6], 16, %s736, [#allocation7]
    $region25: #{tpu_custom_call.1} parent=1 // pred_fallthru
      _
    // Predicated region
    $region26: #{tpu_custom_call.1} parent=1 // pred_check
      _
    $region27: #{tpu_custom_call.1} parent=1 // pred_check_branch
      %740 = sbr.rel (0) target = $region29
    $region28: #{tpu_custom_call.1} parent=1 // pred_region
      %742 = dma.done [#allocation5], 16
    $region29: #{tpu_custom_call.1} parent=1 // pred_fallthru
      _
    // Predicated region
    $region30: #{tpu_custom_call.1} parent=1 // pred_check
      _
    $region31: #{tpu_custom_call.1} parent=1 // pred_check_branch
      %744 = sbr.rel (0) target = $region33
    $region32: #{tpu_custom_call.1} parent=1 // pred_region
      %746 = dma.done [#allocation7], 16
    $region33: #{tpu_custom_call.1} parent=1 // pred_fallthru
      _
    %747 = sfence
    %748 = vsyncpa [#allocation5], 1
    %749 = vsyncpa [#allocation7], 1

</llo_original>
